<compile_context>
chip_gen: v7x
topology: tpu7x:2x2x1
jax: 0.10.0
libtpu: 0.0.40
codegen_flags: <defaults>
</compile_context>

<pallas_src>
import string

import numpy as np
import jax
import jax.numpy as jnp
from jax.experimental import pallas as pl
from jax.experimental.pallas import tpu as pltpu

# ---------------------------------------------------------------------------
# Dictionaries from the PyTorch module (host-side string -> int maps)
# ---------------------------------------------------------------------------
LETTER_TO_NUM = {'C': 4, 'D': 3, 'S': 15, 'Q': 5, 'K': 11, 'I': 9, 'P': 14,
                 'T': 16, 'F': 13, 'A': 0, 'G': 7, 'H': 8, 'E': 6, 'L': 10,
                 'R': 1, 'W': 17, 'V': 19, 'N': 2, 'Y': 18, 'M': 12}
LETTER3TO1 = {'CYS': 'C', 'ASP': 'D', 'SER': 'S', 'GLN': 'Q', 'LYS': 'K',
              'ILE': 'I', 'PRO': 'P', 'THR': 'T', 'PHE': 'F', 'ALA': 'A',
              'GLY': 'G', 'HIS': 'H', 'GLU': 'E', 'LEU': 'L', 'ARG': 'R',
              'TRP': 'W', 'VAL': 'V', 'ASN': 'N', 'TYR': 'Y', 'MET': 'M',
              'LYN': 'K'}
AA3_ALPHABET = list(LETTER3TO1.keys())
CHAIN_ALPHABET = string.ascii_uppercase


# ---------------------------------------------------------------------------
# Pallas kernel: coordinate interleave  (3, N_res, 4) -> (N_res, 12)
# ---------------------------------------------------------------------------
def _interleave_kernel(xyz_ref, crd_ref):
    # xyz_ref : (3, N_res, 4) f32   coordinate planes (x, y, z), atoms N,CA,C,O
    # crd_ref : (N_res, 12)   f32   interleaved [x y z] per atom; row-major
    #                               reshape to (N_res, 4, 3) in glue is free.
    x = xyz_ref[0]          # (N_res, 4)
    y = xyz_ref[1]
    z = xyz_ref[2]
    # Four 3-wide stores instead of one 12-way single-lane concat: fewer XLU
    # shuffles and far less vreg pressure (per performance review).
    for a in range(4):      # atom order N, CA, C, O
        crd_ref[:, 3 * a:3 * a + 3] = jnp.concatenate(
            [x[:, a:a + 1], y[:, a:a + 1], z[:, a:a + 1]], axis=1)


def pdb_coords(x, y, z):
    """Interleave x/y/z coordinate columns into (N_res, 4, 3) via one
    single-block pallas_call (1 input DMA, 1 output DMA, no padding)."""
    n_atoms = x.shape[0]
    assert n_atoms % 4 == 0
    n_res = n_atoms // 4

    # One stacked input buffer (cheap contiguous stack + free reshape in glue).
    xyz = jnp.stack([x.astype(jnp.float32),
                     y.astype(jnp.float32),
                     z.astype(jnp.float32)], axis=0).reshape(3, n_res, 4)

    # TODO(synk): for very large structures (≳8K residues vs. v5e's 16 MiB
    # scoped-VMEM default, ≳16K vs. v7x's limits), tile the residue axis with
    # a ("parallel",) grid of 128-multiple blocks and/or emit a lane-dense
    # (n_res*12//128, 128) crd slab; typical PDB sizes fit a single block.
    crd12 = pl.pallas_call(
        _interleave_kernel,
        out_shape=jax.ShapeDtypeStruct((n_res, 12), jnp.float32),
        in_specs=[pl.BlockSpec(memory_space=pltpu.MemorySpace.VMEM)],
        out_specs=pl.BlockSpec(memory_space=pltpu.MemorySpace.VMEM),
    )(xyz)

    return crd12.reshape(n_res, 4, 3)       # free row-major reshape


# ---------------------------------------------------------------------------
# Forward pass (equivalent of PDB_parser.forward on already-parsed atoms)
# ---------------------------------------------------------------------------
def pdb_parser_forward(x, y, z, res_names3, chain_chars, id_aa):
    """
    x, y, z      : (N_atoms,) f32 coordinate columns (N, CA, C, O per residue)
    res_names3   : python list[str] of length N_atoms, 3-letter residue names
    chain_chars  : python list[str] of length N_atoms, single chain letters
    id_aa        : python list[int] of length N_atoms, residue sequence numbers
    """
    # TODO(synk): file reading, pandas dataframe construction, occupancy-based
    # _choose_atom and _fill_missing_atoms have no Pallas equivalent; we assume
    # occupancy == 1 and no missing atoms (the clean path of the module).
    n_atoms = x.shape[0]
    assert n_atoms % 4 == 0
    n_res = n_atoms // 4

    # --- Pallas kernel: coordinate interleave only ---
    crd = pdb_coords(x, y, z)

    # --- host-side encodings (mirror the module's list comprehensions; a
    #     KeyError on unknown residue/chain letters matches torch behaviour) ---
    res3_per_res = res_names3[0:-1:4]         # seq = df['AA'].values[0:-1:4]
    chain_per_res = chain_chars[0:-1:4]

    int_seq = jnp.asarray(np.array(
        [LETTER_TO_NUM[LETTER3TO1[a]] for a in res3_per_res], dtype=np.int32))

    # dict_chain: chain letter -> dense index in order of first occurrence
    chains_unique = []
    for c in chain_chars:
        if c not in chains_unique:
            chains_unique.append(c)
    dict_chain = {c: i for i, c in enumerate(chains_unique)}
    chain_idx = jnp.asarray(np.array(
        [dict_chain[c] for c in chain_per_res], dtype=np.float32))

    # missing is constant all-False in this path (zeros_like(int_seq).bool())
    missing = jnp.zeros((n_res,), dtype=jnp.bool_)

    # nb_var check (glue, mirrors the print/warning in the original)
    nb_var = 0
    for c in chains_unique:
        nb_var += len({i for i, cc in zip(id_aa, chain_chars) if cc == c})
    print((n_atoms, 3), nb_var)
    if n_atoms != nb_var * 4:
        print('Missing atoms detected: !missing residues will be ignored!')

    seq = [LETTER3TO1[a] for a in res3_per_res]

    dico = dict()
    dico['int_seq'] = int_seq                 # int32 (torch used int64)
    dico['seq'] = seq
    dico['missing'] = missing                 # bool, all False
    dico['coordinates'] = crd                 # (N_res, 4, 3) float32
    dico['chain_idx'] = chain_idx             # float32
    dico['num_chains'] = len(chains_unique)
    dico['start_num'] = id_aa[1]              # df['id_aa'].iat[1]
    assert dico['coordinates'].shape[0] == dico['int_seq'].shape[0], \
        'Sequence length mismatch coordinates length. Check no atom is missing'
    return dico


# ---------------------------------------------------------------------------
# main
# ---------------------------------------------------------------------------
if __name__ == "__main__":
    n_res = 32
    n_atoms = n_res * 4

    key = jax.random.PRNGKey(0)
    kx, ky, kz, ka = jax.random.split(key, 4)
    x = jax.random.normal(kx, (n_atoms,), dtype=jnp.float32) * 10.0
    y = jax.random.normal(ky, (n_atoms,), dtype=jnp.float32) * 10.0
    z = jax.random.normal(kz, (n_atoms,), dtype=jnp.float32) * 10.0

    # deterministic residue names (3-letter), one per residue, 4 atoms each
    aa_ids = jax.random.randint(ka, (n_res,), 0, len(AA3_ALPHABET))
    res_names3, chain_chars, id_aa = [], [], []
    for r in range(n_res):
        name3 = AA3_ALPHABET[int(aa_ids[r])]
        chain = 'A' if r < n_res // 2 else 'B'      # two chains
        for _ in range(4):                          # N, CA, C, O
            res_names3.append(name3)
            chain_chars.append(chain)
            id_aa.append(r + 1)

    dico = pdb_parser_forward(x, y, z, res_names3, chain_chars, id_aa)
    jax.block_until_ready(dico['coordinates'])
    jax.block_until_ready(dico['int_seq'])
    jax.block_until_ready(dico['chain_idx'])
    jax.block_until_ready(dico['missing'])

    # sanity checks against plain-JAX reference
    ref_crd = jnp.stack([x, y, z], axis=1).reshape(-1, 4, 3)
    ref_int_seq = jnp.array(
        [LETTER_TO_NUM[LETTER3TO1[a]] for a in res_names3[0:-1:4]],
        dtype=jnp.int32)
    ref_chain_idx = jnp.array(
        [0.0 if c == 'A' else 1.0 for c in chain_chars[0:-1:4]],
        dtype=jnp.float32)
    assert dico['coordinates'].shape == (n_res, 4, 3)
    assert jnp.allclose(dico['coordinates'], ref_crd)
    assert jnp.array_equal(dico['int_seq'], ref_int_seq)
    assert jnp.array_equal(dico['chain_idx'], ref_chain_idx)
    assert not bool(jnp.any(dico['missing']))
    assert dico['num_chains'] == 2 and dico['start_num'] == 1

    print("KERNEL_OK")
</pallas_src>

<mosaic_0001>
module attributes {stable_mosaic.version = 11 : i64} {
  func.func @_interleave_kernel(%arg0: memref<3x32x4xf32, #tpu.memory_space<vmem>>, %arg1: memref<32x12xf32, #tpu.memory_space<vmem>>) attributes {dimension_semantics = [], scalar_prefetch = 0 : i64, scratch_operands = 0 : i64, tpu.core_type = #tpu.core_type<tc>} {
    %c0 = arith.constant 0 : index
    %c0_0 = arith.constant 0 : index
    %c0_1 = arith.constant 0 : index
    %0 = vector.load %arg0[%c0, %c0_0, %c0_1] : memref<3x32x4xf32, #tpu.memory_space<vmem>>, vector<1x32x4xf32>
    %1 = vector.shape_cast %0 : vector<1x32x4xf32> to vector<32x4xf32>
    %c1 = arith.constant 1 : index
    %c0_2 = arith.constant 0 : index
    %c0_3 = arith.constant 0 : index
    %2 = vector.load %arg0[%c1, %c0_2, %c0_3] : memref<3x32x4xf32, #tpu.memory_space<vmem>>, vector<1x32x4xf32>
    %3 = vector.shape_cast %2 : vector<1x32x4xf32> to vector<32x4xf32>
    %c2 = arith.constant 2 : index
    %c0_4 = arith.constant 0 : index
    %c0_5 = arith.constant 0 : index
    %4 = vector.load %arg0[%c2, %c0_4, %c0_5] : memref<3x32x4xf32, #tpu.memory_space<vmem>>, vector<1x32x4xf32>
    %5 = vector.shape_cast %4 : vector<1x32x4xf32> to vector<32x4xf32>
    %6 = vector.extract_strided_slice %1 {offsets = [0, 0], sizes = [32, 1], strides = [1, 1]} : vector<32x4xf32> to vector<32x1xf32>
    %7 = vector.extract_strided_slice %3 {offsets = [0, 0], sizes = [32, 1], strides = [1, 1]} : vector<32x4xf32> to vector<32x1xf32>
    %8 = vector.extract_strided_slice %5 {offsets = [0, 0], sizes = [32, 1], strides = [1, 1]} : vector<32x4xf32> to vector<32x1xf32>
    %9 = tpu.concatenate %6, %7, %8 in 1 : vector<32x1xf32>, vector<32x1xf32>, vector<32x1xf32> -> vector<32x3xf32>
    %c0_6 = arith.constant 0 : index
    %c0_7 = arith.constant 0 : index
    %10 = vector.load %arg1[%c0_6, %c0_7] : memref<32x12xf32, #tpu.memory_space<vmem>>, vector<32x3xf32>
    tpu.vector_store %arg1[%c0_6, %c0_7], %9 {strides = array<i32>} : memref<32x12xf32, #tpu.memory_space<vmem>>, vector<32x3xf32>,
    %11 = vector.extract_strided_slice %1 {offsets = [0, 1], sizes = [32, 1], strides = [1, 1]} : vector<32x4xf32> to vector<32x1xf32>
    %12 = vector.extract_strided_slice %3 {offsets = [0, 1], sizes = [32, 1], strides = [1, 1]} : vector<32x4xf32> to vector<32x1xf32>
    %13 = vector.extract_strided_slice %5 {offsets = [0, 1], sizes = [32, 1], strides = [1, 1]} : vector<32x4xf32> to vector<32x1xf32>
    %14 = tpu.concatenate %11, %12, %13 in 1 : vector<32x1xf32>, vector<32x1xf32>, vector<32x1xf32> -> vector<32x3xf32>
    %c0_8 = arith.constant 0 : index
    %c3 = arith.constant 3 : index
    %15 = vector.load %arg1[%c0_8, %c3] : memref<32x12xf32, #tpu.memory_space<vmem>>, vector<32x3xf32>
    tpu.vector_store %arg1[%c0_8, %c3], %14 {strides = array<i32>} : memref<32x12xf32, #tpu.memory_space<vmem>>, vector<32x3xf32>,
    %16 = vector.extract_strided_slice %1 {offsets = [0, 2], sizes = [32, 1], strides = [1, 1]} : vector<32x4xf32> to vector<32x1xf32>
    %17 = vector.extract_strided_slice %3 {offsets = [0, 2], sizes = [32, 1], strides = [1, 1]} : vector<32x4xf32> to vector<32x1xf32>
    %18 = vector.extract_strided_slice %5 {offsets = [0, 2], sizes = [32, 1], strides = [1, 1]} : vector<32x4xf32> to vector<32x1xf32>
    %19 = tpu.concatenate %16, %17, %18 in 1 : vector<32x1xf32>, vector<32x1xf32>, vector<32x1xf32> -> vector<32x3xf32>
    %c0_9 = arith.constant 0 : index
    %c6 = arith.constant 6 : index
    %20 = vector.load %arg1[%c0_9, %c6] : memref<32x12xf32, #tpu.memory_space<vmem>>, vector<32x3xf32>
    tpu.vector_store %arg1[%c0_9, %c6], %19 {strides = array<i32>} : memref<32x12xf32, #tpu.memory_space<vmem>>, vector<32x3xf32>,
    %21 = vector.extract_strided_slice %1 {offsets = [0, 3], sizes = [32, 1], strides = [1, 1]} : vector<32x4xf32> to vector<32x1xf32>
    %22 = vector.extract_strided_slice %3 {offsets = [0, 3], sizes = [32, 1], strides = [1, 1]} : vector<32x4xf32> to vector<32x1xf32>
    %23 = vector.extract_strided_slice %5 {offsets = [0, 3], sizes = [32, 1], strides = [1, 1]} : vector<32x4xf32> to vector<32x1xf32>
    %24 = tpu.concatenate %21, %22, %23 in 1 : vector<32x1xf32>, vector<32x1xf32>, vector<32x1xf32> -> vector<32x3xf32>
    %c0_10 = arith.constant 0 : index
    %c9 = arith.constant 9 : index
    %25 = vector.load %arg1[%c0_10, %c9] : memref<32x12xf32, #tpu.memory_space<vmem>>, vector<32x3xf32>
    tpu.vector_store %arg1[%c0_10, %c9], %24 {strides = array<i32>} : memref<32x12xf32, #tpu.memory_space<vmem>>, vector<32x3xf32>,
    return
  }
}

</mosaic_0001>

<llo_original>
// kernel: tpu_custom_call.1
$region0: #{tpu_custom_call.1}
  #allocation0 [shape = 'u32[]', space=smem, size = 0x4, offset = 0x4, fixed_abs, tag = 'smem constant byte address 0x4 - core index']
  #allocation1 [shape = 'u32[144,128]{1,0:T(1,128)}', space=vmem, size = 0x12000, scoped, tag = 'internal scratch']
  %s0 = inlined_call_operand.vmem [shape: f32[3,32,4], index: 0, kind: input, shape index: {}]
  %s1 = inlined_call_operand.vmem [shape: f32[32,12], index: 1, kind: output, shape index: {}]
  %s2 = sld [smem:[#allocation0]]
  $region14: #{tpu_custom_call.1} parent=0
    _
  %s4 = ssub.s32 1, %s2
  %s5 = scalar_select 0, %s4, %s2
  // Predicated region
  $region2: #{tpu_custom_call.1} parent=0 // pred_check
    _
  $region3: #{tpu_custom_call.1} parent=0 // pred_check_branch
    %7 = sbr.rel (0) target = $region5
  $region4: #{tpu_custom_call.1} parent=0 // pred_region
    _
  $region5: #{tpu_custom_call.1} parent=0 // pred_fallthru
    _
  %v8 = vld [vmem:[%s0] sm:$0xff]
  %v9 = vld [vmem:[%s0 + $0x8] sm:$0xff]
  %v10 = vld [vmem:[%s0 + $0x10] sm:$0xff]
  %v11 = vld [vmem:[%s0 + $0x18] sm:$0xff]
  %s12 = scalar_lea.vmem %s0, 32
  %v13 = vld [vmem:[%s12] sm:$0xff]
  %v14 = vld [vmem:[%s12 + $0x8] sm:$0xff]
  %v15 = vld [vmem:[%s12 + $0x10] sm:$0xff]
  %v16 = vld [vmem:[%s12 + $0x18] sm:$0xff]
  %s17 = scalar_lea.vmem %s0, 64
  %v18 = vld [vmem:[%s17] sm:$0xff]
  %v19 = vld [vmem:[%s17 + $0x8] sm:$0xff]
  %v20 = vld [vmem:[%s17 + $0x10] sm:$0xff]
  %v21 = vld [vmem:[%s17 + $0x18] sm:$0xff]
  %26 = vrot.lane.b32.xlu0 %v13, 1
  %v27 = vpop.permute.xlu0 %26
  %28 = vrot.lane.b32.xlu0 %v14, 1
  %v29 = vpop.permute.xlu0 %28
  %30 = vrot.lane.b32.xlu0 %v15, 1
  %v31 = vpop.permute.xlu0 %30
  %32 = vrot.lane.b32.xlu0 %v16, 1
  %v33 = vpop.permute.xlu0 %32
  %42 = vrot.lane.b32.xlu0 %v18, 2
  %v43 = vpop.permute.xlu0 %42
  %44 = vrot.lane.b32.xlu0 %v19, 2
  %v45 = vpop.permute.xlu0 %44
  %46 = vrot.lane.b32.xlu0 %v20, 2
  %v47 = vpop.permute.xlu0 %46
  %48 = vrot.lane.b32.xlu0 %v21, 2
  %v49 = vpop.permute.xlu0 %48
  %vm54 = vcmask 7168
  %v55 = vsel %vm54, %v8, %v27
  %v56 = vsel %vm54, %v9, %v29
  %v57 = vsel %vm54, %v10, %v31
  %v58 = vsel %vm54, %v11, %v33
  %vm59 = vcmask 15360
  %v60 = vsel %vm59, %v55, %v43
  %v61 = vsel %vm59, %v56, %v45
  %v62 = vsel %vm59, %v57, %v47
  %v63 = vsel %vm59, %v58, %v49
  %vm64 = vcmask 23552
  %65 = vst.msk [vmem:[%s1] sm:$0xff] %vm64, %v60
  %66 = vst.msk [vmem:[%s1 + $0x8] sm:$0xff] %vm64, %v61
  %67 = vst.msk [vmem:[%s1 + $0x10] sm:$0xff] %vm64, %v62
  %68 = vst.msk [vmem:[%s1 + $0x18] sm:$0xff] %vm64, %v63
  %73 = vrot.lane.b32.xlu0 %v8, 127
  %v74 = vpop.permute.xlu0 %73
  %75 = vrot.lane.b32.xlu0 %v9, 127
  %v76 = vpop.permute.xlu0 %75
  %77 = vrot.lane.b32.xlu0 %v10, 127
  %v78 = vpop.permute.xlu0 %77
  %79 = vrot.lane.b32.xlu0 %v11, 127
  %v80 = vpop.permute.xlu0 %79
  %85 = vrot.lane.b32.xlu0 %v18, 1
  %v86 = vpop.permute.xlu0 %85
  %87 = vrot.lane.b32.xlu0 %v19, 1
  %v88 = vpop.permute.xlu0 %87
  %89 = vrot.lane.b32.xlu0 %v20, 1
  %v90 = vpop.permute.xlu0 %89
  %91 = vrot.lane.b32.xlu0 %v21, 1
  %v92 = vpop.permute.xlu0 %91
  %v97 = vsel %vm54, %v74, %v13
  %v98 = vsel %vm54, %v76, %v14
  %v99 = vsel %vm54, %v78, %v15
  %v100 = vsel %vm54, %v80, %v16
  %v101 = vsel %vm59, %v97, %v86
  %v102 = vsel %vm59, %v98, %v88
  %v103 = vsel %vm59, %v99, %v90
  %v104 = vsel %vm59, %v100, %v92
  %109 = vrot.lane.b32.xlu0 %v101, 3
  %v110 = vpop.permute.xlu0 %109
  %111 = vrot.lane.b32.xlu0 %v102, 3
  %v112 = vpop.permute.xlu0 %111
  %113 = vrot.lane.b32.xlu0 %v103, 3
  %v114 = vpop.permute.xlu0 %113
  %115 = vrot.lane.b32.xlu0 %v104, 3
  %v116 = vpop.permute.xlu0 %115
  %vm121 = vcmask 48152
  %122 = vst.msk [vmem:[%s1] sm:$0xff] %vm121, %v110
  %123 = vst.msk [vmem:[%s1 + $0x8] sm:$0xff] %vm121, %v112
  %124 = vst.msk [vmem:[%s1 + $0x10] sm:$0xff] %vm121, %v114
  %125 = vst.msk [vmem:[%s1 + $0x18] sm:$0xff] %vm121, %v116
  %126 = vrot.lane.b32.xlu0 %v8, 126
  %v127 = vpop.permute.xlu0 %126
  %128 = vrot.lane.b32.xlu0 %v9, 126
  %v129 = vpop.permute.xlu0 %128
  %130 = vrot.lane.b32.xlu0 %v10, 126
  %v131 = vpop.permute.xlu0 %130
  %132 = vrot.lane.b32.xlu0 %v11, 126
  %v133 = vpop.permute.xlu0 %132
  %138 = vrot.lane.b32.xlu0 %v13, 127
  %v139 = vpop.permute.xlu0 %138
  %140 = vrot.lane.b32.xlu0 %v14, 127
  %v141 = vpop.permute.xlu0 %140
  %142 = vrot.lane.b32.xlu0 %v15, 127
  %v143 = vpop.permute.xlu0 %142
  %144 = vrot.lane.b32.xlu0 %v16, 127
  %v145 = vpop.permute.xlu0 %144
  %v150 = vsel %vm54, %v127, %v139
  %v151 = vsel %vm54, %v129, %v141
  %v152 = vsel %vm54, %v131, %v143
  %v153 = vsel %vm54, %v133, %v145
  %v154 = vsel %vm59, %v150, %v18
  %v155 = vsel %vm59, %v151, %v19
  %v156 = vsel %vm59, %v152, %v20
  %v157 = vsel %vm59, %v153, %v21
  %162 = vrot.lane.b32.xlu0 %v154, 6
  %v163 = vpop.permute.xlu0 %162
  %164 = vrot.lane.b32.xlu0 %v155, 6
  %v165 = vpop.permute.xlu0 %164
  %166 = vrot.lane.b32.xlu0 %v156, 6
  %v167 = vpop.permute.xlu0 %166
  %168 = vrot.lane.b32.xlu0 %v157, 6
  %v169 = vpop.permute.xlu0 %168
  %vm174 = vcmask 72752
  %175 = vst.msk [vmem:[%s1] sm:$0xff] %vm174, %v163
  %176 = vst.msk [vmem:[%s1 + $0x8] sm:$0xff] %vm174, %v165
  %177 = vst.msk [vmem:[%s1 + $0x10] sm:$0xff] %vm174, %v167
  %178 = vst.msk [vmem:[%s1 + $0x18] sm:$0xff] %vm174, %v169
  %179 = vrot.lane.b32.xlu0 %v8, 125
  %v180 = vpop.permute.xlu0 %179
  %181 = vrot.lane.b32.xlu0 %v9, 125
  %v182 = vpop.permute.xlu0 %181
  %183 = vrot.lane.b32.xlu0 %v10, 125
  %v184 = vpop.permute.xlu0 %183
  %185 = vrot.lane.b32.xlu0 %v11, 125
  %v186 = vpop.permute.xlu0 %185
  %191 = vrot.lane.b32.xlu0 %v13, 126
  %v192 = vpop.permute.xlu0 %191
  %193 = vrot.lane.b32.xlu0 %v14, 126
  %v194 = vpop.permute.xlu0 %193
  %195 = vrot.lane.b32.xlu0 %v15, 126
  %v196 = vpop.permute.xlu0 %195
  %197 = vrot.lane.b32.xlu0 %v16, 126
  %v198 = vpop.permute.xlu0 %197
  %203 = vrot.lane.b32.xlu0 %v18, 127
  %v204 = vpop.permute.xlu0 %203
  %205 = vrot.lane.b32.xlu0 %v19, 127
  %v206 = vpop.permute.xlu0 %205
  %207 = vrot.lane.b32.xlu0 %v20, 127
  %v208 = vpop.permute.xlu0 %207
  %209 = vrot.lane.b32.xlu0 %v21, 127
  %v210 = vpop.permute.xlu0 %209
  %v215 = vsel %vm54, %v180, %v192
  %v216 = vsel %vm54, %v182, %v194
  %v217 = vsel %vm54, %v184, %v196
  %v218 = vsel %vm54, %v186, %v198
  %v219 = vsel %vm59, %v215, %v204
  %v220 = vsel %vm59, %v216, %v206
  %v221 = vsel %vm59, %v217, %v208
  %v222 = vsel %vm59, %v218, %v210
  %227 = vrot.lane.b32.xlu0 %v219, 9
  %v228 = vpop.permute.xlu0 %227
  %229 = vrot.lane.b32.xlu0 %v220, 9
  %v230 = vpop.permute.xlu0 %229
  %231 = vrot.lane.b32.xlu0 %v221, 9
  %v232 = vpop.permute.xlu0 %231
  %233 = vrot.lane.b32.xlu0 %v222, 9
  %v234 = vpop.permute.xlu0 %233
  %vm239 = vcmask 97352
  %240 = vst.msk [vmem:[%s1] sm:$0xff] %vm239, %v228
  %241 = vst.msk [vmem:[%s1 + $0x8] sm:$0xff] %vm239, %v230
  %242 = vst.msk [vmem:[%s1 + $0x10] sm:$0xff] %vm239, %v232
  %243 = vst.msk [vmem:[%s1 + $0x18] sm:$0xff] %vm239, %v234
  // Predicated region
  $region6: #{tpu_custom_call.1} parent=0 // pred_check
    _
  $region7: #{tpu_custom_call.1} parent=0 // pred_check_branch
    %245 = sbr.rel (0) target = $region9
  $region8: #{tpu_custom_call.1} parent=0 // pred_region
    _
  $region9: #{tpu_custom_call.1} parent=0 // pred_fallthru
    _
  // Predicated region
  $region10: #{tpu_custom_call.1} parent=0 // pred_check
    _
  $region11: #{tpu_custom_call.1} parent=0 // pred_check_branch
    %247 = sbr.rel (0) target = $region13
  $region12: #{tpu_custom_call.1} parent=0 // pred_region
    _
  $region13: #{tpu_custom_call.1} parent=0 // pred_fallthru
    _

</llo_original>
